<compile_context>
chip_gen: v6e
topology: v6e:2x2x1
jax: 0.10.0
libtpu: 0.0.40
codegen_flags: <defaults>
</compile_context>

<pallas_src>
import functools
import math

import jax
import jax.numpy as jnp
from jax.experimental import pallas as pl
from jax.experimental.pallas import tpu as pltpu


# ----------------------------------------------------------------------------
# Kernel: one grid step processes G = BH / num_blocks (batch*head) slices.
# ----------------------------------------------------------------------------
def _sdpa_kernel(q_ref, k_ref, v_ref, ctx_ref, prob_ref, *, scale):
    # q: [G, Sq, dh], k/v: [G, Sk, dh]
    q = q_ref[...].astype(jnp.float32) * scale          # pre-scale Q (cheaper than scaling scores)
    k = k_ref[...].astype(jnp.float32)
    v = v_ref[...]

    # scores[g, q, k] = sum_d q[g, q, d] * k[g, k, d]   (no K transpose needed)
    s = jax.lax.dot_general(
        q, k,
        dimension_numbers=(((2,), (2,)), ((0,), (0,))),
        preferred_element_type=jnp.float32)              # [G, Sq, Sk]

    # numerically-stable softmax along the key axis
    m = jnp.max(s, axis=-1, keepdims=True)
    e = jnp.exp(s - m)
    denom = jnp.sum(e, axis=-1, keepdims=True)
    p = e * pl.reciprocal(denom, approx=True)            # EUP reciprocal, VALU-free normalize
    prob_ref[...] = p.astype(prob_ref.dtype)

    # context[g, q, d] = sum_k p[g, q, k] * v[g, k, d]
    ctx = jax.lax.dot_general(
        p.astype(v.dtype), v,
        dimension_numbers=(((2,), (1,)), ((0,), (0,))),
        preferred_element_type=jnp.float32)               # [G, Sq, dh]
    ctx_ref[...] = ctx.astype(ctx_ref.dtype)


# ----------------------------------------------------------------------------
# Wrapper: accepts Q [..., Sq, dh], K/V [..., Sk, dh] (like the PyTorch module)
# ----------------------------------------------------------------------------
def scaled_dot_product_attention(Q, K, V, d_head=None):
    *lead, Sq, dh = Q.shape
    Sk = K.shape[-2]
    if d_head is None:
        d_head = dh
    scale = 1.0 / (d_head ** 0.5)

    BH = math.prod(lead) if lead else 1
    q = Q.reshape(BH, Sq, dh)
    k = K.reshape(BH, Sk, dh)
    v = V.reshape(BH, Sk, dh)

    # Keep a parallel grid axis of >= 2 when possible so v7x's two TensorCores
    # both get work; each step still carries all heads of its block (no 1-head
    # micro-blocks), so launch/DMA overhead stays at 1-2 steps total.
    nb = 2 if (BH >= 2 and BH % 2 == 0) else 1
    G = BH // nb

    ctx, prob = pl.pallas_call(
        functools.partial(_sdpa_kernel, scale=scale),
        grid=(nb,),
        in_specs=[
            pl.BlockSpec((G, Sq, dh), lambda i: (i, 0, 0)),
            pl.BlockSpec((G, Sk, dh), lambda i: (i, 0, 0)),
            pl.BlockSpec((G, Sk, dh), lambda i: (i, 0, 0)),
        ],
        out_specs=[
            pl.BlockSpec((G, Sq, dh), lambda i: (i, 0, 0)),
            pl.BlockSpec((G, Sq, Sk), lambda i: (i, 0, 0)),
        ],
        out_shape=[
            jax.ShapeDtypeStruct((BH, Sq, dh), Q.dtype),
            jax.ShapeDtypeStruct((BH, Sq, Sk), Q.dtype),
        ],
        compiler_params=pltpu.CompilerParams(dimension_semantics=("parallel",)),
    )(q, k, v)

    ctx = ctx.reshape(*lead, Sq, dh)
    prob = prob.reshape(*lead, Sq, Sk)
    return ctx, prob


# ----------------------------------------------------------------------------
if __name__ == "__main__":
    # Shapes implied by the original args: d_head=8, n_head=4, window_size=8.
    B, H, S, dh = 2, 4, 8, 8

    key = jax.random.PRNGKey(0)
    kq, kk, kv = jax.random.split(key, 3)
    Q = jax.random.normal(kq, (B, H, S, dh), jnp.float32)
    K = jax.random.normal(kk, (B, H, S, dh), jnp.float32)
    V = jax.random.normal(kv, (B, H, S, dh), jnp.float32)

    ctx, prob = scaled_dot_product_attention(Q, K, V, d_head=dh)
    jax.block_until_ready(ctx)
    jax.block_until_ready(prob)

    # Plain-JAX reference (same math as the PyTorch forward).
    scale = 1.0 / (dh ** 0.5)
    scores = jnp.einsum("bhqd,bhkd->bhqk", Q, K) * scale
    ref_prob = jax.nn.softmax(scores, axis=-1)
    ref_ctx = jnp.einsum("bhqk,bhkd->bhqd", ref_prob, V)

    assert ctx.shape == (B, H, S, dh)
    assert prob.shape == (B, H, S, S)
    # Loose tolerance only to accommodate the EUP approx reciprocal in softmax.
    assert jnp.allclose(prob, ref_prob, atol=5e-3, rtol=5e-3)
    assert jnp.allclose(ctx, ref_ctx, atol=5e-3, rtol=5e-3)

    print("KERNEL_OK")
</pallas_src>

<mosaic_0001>
module attributes {stable_mosaic.version = 11 : i64} {
  func.func @_sdpa_kernel(%arg0: i32, %arg1: memref<4x8x8xf32, #tpu.memory_space<vmem>>, %arg2: memref<4x8x8xf32, #tpu.memory_space<vmem>>, %arg3: memref<4x8x8xf32, #tpu.memory_space<vmem>>, %arg4: memref<4x8x8xf32, #tpu.memory_space<vmem>>, %arg5: memref<4x8x8xf32, #tpu.memory_space<vmem>>) attributes {dimension_semantics = [#tpu.dimension_semantics<parallel>], iteration_bounds = array<i64: 2>, scalar_prefetch = 0 : i64, scratch_operands = 0 : i64, tpu.core_type = #tpu.core_type<tc>, window_params = [{transform_indices = @transform_0, window_bounds = array<i64: 4, 8, 8>}, {transform_indices = @transform_1, window_bounds = array<i64: 4, 8, 8>}, {transform_indices = @transform_2, window_bounds = array<i64: 4, 8, 8>}, {transform_indices = @transform_3, window_bounds = array<i64: 4, 8, 8>}, {transform_indices = @transform_4, window_bounds = array<i64: 4, 8, 8>}]} {
    %c0 = arith.constant 0 : index
    %c0_0 = arith.constant 0 : index
    %c0_1 = arith.constant 0 : index
    %0 = vector.load %arg1[%c0, %c0_0, %c0_1] : memref<4x8x8xf32, #tpu.memory_space<vmem>>, vector<4x8x8xf32>
    %cst = arith.constant 0.353553385 : f32
    %1 = vector.broadcast %cst : f32 to vector<4x8x8xf32>
    %2 = arith.mulf %0, %1 : vector<4x8x8xf32>
    %c0_2 = arith.constant 0 : index
    %c0_3 = arith.constant 0 : index
    %c0_4 = arith.constant 0 : index
    %3 = vector.load %arg2[%c0_2, %c0_3, %c0_4] : memref<4x8x8xf32, #tpu.memory_space<vmem>>, vector<4x8x8xf32>
    %c0_5 = arith.constant 0 : index
    %c0_6 = arith.constant 0 : index
    %c0_7 = arith.constant 0 : index
    %4 = vector.load %arg3[%c0_5, %c0_6, %c0_7] : memref<4x8x8xf32, #tpu.memory_space<vmem>>, vector<4x8x8xf32>
    %cst_8 = arith.constant dense<0.000000e+00> : vector<4x8x8xf32>
    %5 = tpu.matmul %2, %3, %cst_8 {dimension_numbers = #tpu.dot_dimension_numbers<[2], [2], [1], [1], [0, 0, 0, 1, 1, 1], [0], [0]>} : vector<4x8x8xf32>, vector<4x8x8xf32>, vector<4x8x8xf32> -> vector<4x8x8xf32>
    %cst_9 = arith.constant dense<0xFF800000> : vector<4x8xf32>
    %6 = vector.multi_reduction <maximumf>, %5, %cst_9 [2] : vector<4x8x8xf32> to vector<4x8xf32>
    %7 = vector.shape_cast %6 : vector<4x8xf32> to vector<4x8x1xf32>
    %8 = vector.broadcast %7 : vector<4x8x1xf32> to vector<4x8x8xf32>
    %9 = arith.subf %5, %8 : vector<4x8x8xf32>
    %10 = math.exp %9 : vector<4x8x8xf32>
    %cst_10 = arith.constant dense<0.000000e+00> : vector<4x8xf32>
    %11 = vector.multi_reduction <add>, %10, %cst_10 [2] : vector<4x8x8xf32> to vector<4x8xf32>
    %12 = vector.shape_cast %11 : vector<4x8xf32> to vector<4x8x1xf32>
    %13 = tpu.reciprocal %12 {approx = true} : vector<4x8x1xf32> -> vector<4x8x1xf32>
    %14 = vector.broadcast %13 : vector<4x8x1xf32> to vector<4x8x8xf32>
    %15 = arith.mulf %10, %14 : vector<4x8x8xf32>
    %c0_11 = arith.constant 0 : index
    %c0_12 = arith.constant 0 : index
    %c0_13 = arith.constant 0 : index
    %16 = vector.load %arg5[%c0_11, %c0_12, %c0_13] : memref<4x8x8xf32, #tpu.memory_space<vmem>>, vector<4x8x8xf32>
    tpu.vector_store %arg5[%c0_11, %c0_12, %c0_13], %15 {strides = array<i32>} : memref<4x8x8xf32, #tpu.memory_space<vmem>>, vector<4x8x8xf32>,
    %cst_14 = arith.constant dense<0.000000e+00> : vector<4x8x8xf32>
    %17 = tpu.matmul %15, %4, %cst_14 {dimension_numbers = #tpu.dot_dimension_numbers<[2], [1], [1], [2], [0, 0, 0, 1, 1, 2], [0], [0]>} : vector<4x8x8xf32>, vector<4x8x8xf32>, vector<4x8x8xf32> -> vector<4x8x8xf32>
    %c0_15 = arith.constant 0 : index
    %c0_16 = arith.constant 0 : index
    %c0_17 = arith.constant 0 : index
    %18 = vector.load %arg4[%c0_15, %c0_16, %c0_17] : memref<4x8x8xf32, #tpu.memory_space<vmem>>, vector<4x8x8xf32>
    tpu.vector_store %arg4[%c0_15, %c0_16, %c0_17], %17 {strides = array<i32>} : memref<4x8x8xf32, #tpu.memory_space<vmem>>, vector<4x8x8xf32>,
    return
  }
  func.func @transform_0(%arg0: i32) -> (i32, i32, i32) {
    %c0_i32 = arith.constant 0 : i32
    %c0_i32_0 = arith.constant 0 : i32
    %c0_i32_1 = arith.constant 0 : i32
    return %arg0, %c0_i32, %c0_i32_0 : i32, i32, i32
  }
  func.func @transform_1(%arg0: i32) -> (i32, i32, i32) {
    %c0_i32 = arith.constant 0 : i32
    %c0_i32_0 = arith.constant 0 : i32
    %c0_i32_1 = arith.constant 0 : i32
    return %arg0, %c0_i32, %c0_i32_0 : i32, i32, i32
  }
  func.func @transform_2(%arg0: i32) -> (i32, i32, i32) {
    %c0_i32 = arith.constant 0 : i32
    %c0_i32_0 = arith.constant 0 : i32
    %c0_i32_1 = arith.constant 0 : i32
    return %arg0, %c0_i32, %c0_i32_0 : i32, i32, i32
  }
  func.func @transform_3(%arg0: i32) -> (i32, i32, i32) {
    %c0_i32 = arith.constant 0 : i32
    %c0_i32_0 = arith.constant 0 : i32
    %c0_i32_1 = arith.constant 0 : i32
    return %arg0, %c0_i32, %c0_i32_0 : i32, i32, i32
  }
  func.func @transform_4(%arg0: i32) -> (i32, i32, i32) {
    %c0_i32 = arith.constant 0 : i32
    %c0_i32_0 = arith.constant 0 : i32
    %c0_i32_1 = arith.constant 0 : i32
    return %arg0, %c0_i32, %c0_i32_0 : i32, i32, i32
  }
}

</mosaic_0001>

<llo_original>
// kernel: tpu_custom_call.1
$region0: #{tpu_custom_call.1}
  #allocation0 [shape = 'u32[]', space=smem, size = 0x4, offset = 0x4, fixed_abs, tag = 'smem constant byte address 0x4 - core index']
  #allocation1 [shape = 'u32[144,128]{1,0:T(1,128)}', space=vmem, size = 0x12000, scoped, tag = 'internal scratch']
  %s0 = inlined_call_operand.hbm [shape: f32[8,8,8], index: 0, kind: input, shape index: {}]
  %s1 = inlined_call_operand.hbm [shape: f32[8,8,8], index: 1, kind: input, shape index: {}]
  %s2 = inlined_call_operand.hbm [shape: f32[8,8,8], index: 2, kind: input, shape index: {}]
  %s3 = inlined_call_operand.hbm [shape: f32[8,8,8], index: 3, kind: output, shape index: {0}]
  %s4 = inlined_call_operand.hbm [shape: f32[8,8,8], index: 4, kind: output, shape index: {1}]
  %5 = xla_tuple %s3, %s4
  %s6 = sld [smem:[#allocation0]]
  $region65: #{tpu_custom_call.1} parent=0
    _
  %s8 = ssub.s32 1, %s6
  %s9 = scalar_select 0, %s8, %s6
  $region1: #{tpu_custom_call.1} parent=0
    #allocation2 [shape = 'u8[32768]{0}', space=vmem, size = 0x8000, scoped, tag = 'input window, operand 0']
    #allocation3 [shape = 's32[2]{0}', space=sflag, size = 0x8, scoped, tag = 'scoped memory for tpu_custom_call.1']
    #allocation4 [shape = 's32[2]{0}', space=sflag, size = 0x8, scoped, tag = 'scoped memory for tpu_custom_call.1']
    #allocation5 [shape = 'u8[32768]{0}', space=vmem, size = 0x8000, scoped, tag = 'input window, operand 1']
    #allocation6 [shape = 's32[2]{0}', space=sflag, size = 0x8, scoped, tag = 'scoped memory for tpu_custom_call.1']
    #allocation7 [shape = 'u8[32768]{0}', space=vmem, size = 0x8000, scoped, tag = 'input window, operand 2']
    #allocation8 [shape = 'u8[32768]{0}', space=vmem, size = 0x8000, scoped, tag = 'output window, operand 0']
    #allocation9 [shape = 'u8[32768]{0}', space=vmem, size = 0x8000, scoped, tag = 'output window, operand 1']
    #allocation10 [shape = 's32[2]{0}', space=sflag, size = 0x8, scoped, tag = 'scoped memory for tpu_custom_call.1']
    %10 = vsyncpa [#allocation3], 0
    %s11 = scalar_lea.sflag [#allocation3], 1
    %12 = vsyncpa %s11, 0
    %13 = vsyncpa [#allocation6], 0
    %s14 = scalar_lea.sflag [#allocation6], 1
    %15 = vsyncpa %s14, 0
    %16 = vsyncpa [#allocation4], 0
    %s17 = scalar_lea.sflag [#allocation4], 1
    %18 = vsyncpa %s17, 0
    %19 = vsyncpa [#allocation10], 0
    %s20 = scalar_lea.sflag [#allocation10], 1
    %21 = vsyncpa %s20, 0
    loop: start=0, step=1, limit=4
    $region2: #{tpu_custom_call.1} parent=1 // loop_pre_header
      _
    $region3: #{tpu_custom_call.1} parent=1 // loop_header
      %s23 = sphi 0, %s27
      %p24 = scmp.ge.s32.totalorder %s23, 4
      %s33 = sphi 0, %s35
      %s36 = sphi 0, %s33
      %s37 = sphi 0, %s36
      %s53 = sphi 0, %s37
      %s59 = sphi 0, %s61
      %s62 = sphi 0, %s59
      %s63 = sphi 0, %s62
      %s79 = sphi 0, %s63
      %s85 = sphi 0, %s87
      %s88 = sphi 0, %s85
      %s89 = sphi 0, %s88
      %s105 = sphi 0, %s89
      %s111 = sphi 0, %s113
      %s114 = sphi 0, %s111
      %s115 = sphi 0, %s114
      %s131 = sphi 0, %s115
      %s137 = sphi 0, %s139
      %s140 = sphi 0, %s137
      %s141 = sphi 0, %s140
      %s157 = sphi 0, %s141
    $region4: #{tpu_custom_call.1} parent=1 // loop_header_branch
      %26 = sbr.rel (%p24) target = $region8
    $region5: #{tpu_custom_call.1} parent=1 // loop_body
      %s28 = ssub.s32 %s23, 1
      %s29 = ssub.s32 %s23, 2
      %s30 = sadd.s32 %s23, 1
      %s31 = ssub.s32 %s23, %s30
      %p32 = scmp.eq.s32.totalorder %s31, 0
      %s34 = sadd.s32 %s33, 1
      %s35 = scalar_select %p32, %s33, %s34
      %p38 = pneg %p32
      %p39 = scmp.eq.s32.totalorder %s23, 1
      %p40 = por %p38, %p39
      %p41 = scmp.ne.s32.totalorder %s33, %s36
      %p42 = scmp.eq.s32.totalorder %s23, 0
      %p43 = por %p41, %p42
      %p44 = scmp.ne.s32.totalorder %s33, %s36
      %p45 = scmp.eq.s32.totalorder %s28, 1
      %p46 = por %p44, %p45
      %p47 = scmp.ne.s32.totalorder %s36, %s37
      %p48 = scmp.eq.s32.totalorder %s28, 0
      %p49 = por %p47, %p48
      %p50 = scmp.ne.s32.totalorder %s36, %s37
      %p51 = scmp.eq.s32.totalorder %s29, 1
      %p52 = por %p50, %p51
      %p54 = scmp.ne.s32.totalorder %s37, %s53
      %p55 = scmp.eq.s32.totalorder %s29, 0
      %p56 = por %p54, %p55
      %s57 = ssub.s32 %s23, %s30
      %p58 = scmp.eq.s32.totalorder %s57, 0
      %s60 = sadd.s32 %s59, 1
      %s61 = scalar_select %p58, %s59, %s60
      %p64 = pneg %p58
      %p65 = scmp.eq.s32.totalorder %s23, 1
      %p66 = por %p64, %p65
      %p67 = scmp.ne.s32.totalorder %s59, %s62
      %p68 = scmp.eq.s32.totalorder %s23, 0
      %p69 = por %p67, %p68
      %p70 = scmp.ne.s32.totalorder %s59, %s62
      %p71 = scmp.eq.s32.totalorder %s28, 1
      %p72 = por %p70, %p71
      %p73 = scmp.ne.s32.totalorder %s62, %s63
      %p74 = scmp.eq.s32.totalorder %s28, 0
      %p75 = por %p73, %p74
      %p76 = scmp.ne.s32.totalorder %s62, %s63
      %p77 = scmp.eq.s32.totalorder %s29, 1
      %p78 = por %p76, %p77
      %p80 = scmp.ne.s32.totalorder %s63, %s79
      %p81 = scmp.eq.s32.totalorder %s29, 0
      %p82 = por %p80, %p81
      %s83 = ssub.s32 %s23, %s30
      %p84 = scmp.eq.s32.totalorder %s83, 0
      %s86 = sadd.s32 %s85, 1
      %s87 = scalar_select %p84, %s85, %s86
      %p90 = pneg %p84
      %p91 = scmp.eq.s32.totalorder %s23, 1
      %p92 = por %p90, %p91
      %p93 = scmp.ne.s32.totalorder %s85, %s88
      %p94 = scmp.eq.s32.totalorder %s23, 0
      %p95 = por %p93, %p94
      %p96 = scmp.ne.s32.totalorder %s85, %s88
      %p97 = scmp.eq.s32.totalorder %s28, 1
      %p98 = por %p96, %p97
      %p99 = scmp.ne.s32.totalorder %s88, %s89
      %p100 = scmp.eq.s32.totalorder %s28, 0
      %p101 = por %p99, %p100
      %p102 = scmp.ne.s32.totalorder %s88, %s89
      %p103 = scmp.eq.s32.totalorder %s29, 1
      %p104 = por %p102, %p103
      %p106 = scmp.ne.s32.totalorder %s89, %s105
      %p107 = scmp.eq.s32.totalorder %s29, 0
      %p108 = por %p106, %p107
      %s109 = ssub.s32 %s23, %s30
      %p110 = scmp.eq.s32.totalorder %s109, 0
      %s112 = sadd.s32 %s111, 1
      %s113 = scalar_select %p110, %s111, %s112
      %p116 = pneg %p110
      %p117 = scmp.eq.s32.totalorder %s23, 1
      %p118 = por %p116, %p117
      %p119 = scmp.ne.s32.totalorder %s111, %s114
      %p120 = scmp.eq.s32.totalorder %s23, 0
      %p121 = por %p119, %p120
      %p122 = scmp.ne.s32.totalorder %s111, %s114
      %p123 = scmp.eq.s32.totalorder %s28, 1
      %p124 = por %p122, %p123
      %p125 = scmp.ne.s32.totalorder %s114, %s115
      %p126 = scmp.eq.s32.totalorder %s28, 0
      %p127 = por %p125, %p126
      %p128 = scmp.ne.s32.totalorder %s114, %s115
      %p129 = scmp.eq.s32.totalorder %s29, 1
      %p130 = por %p128, %p129
      %p132 = scmp.ne.s32.totalorder %s115, %s131
      %p133 = scmp.eq.s32.totalorder %s29, 0
      %p134 = por %p132, %p133
      %s135 = ssub.s32 %s23, %s30
      %p136 = scmp.eq.s32.totalorder %s135, 0
      %s138 = sadd.s32 %s137, 1
      %s139 = scalar_select %p136, %s137, %s138
      %p142 = pneg %p136
      %p143 = scmp.eq.s32.totalorder %s23, 1
      %p144 = por %p142, %p143
      %p145 = scmp.ne.s32.totalorder %s137, %s140
      %p146 = scmp.eq.s32.totalorder %s23, 0
      %p147 = por %p145, %p146
      %p148 = scmp.ne.s32.totalorder %s137, %s140
      %p149 = scmp.eq.s32.totalorder %s28, 1
      %p150 = por %p148, %p149
      %p151 = scmp.ne.s32.totalorder %s140, %s141
      %p152 = scmp.eq.s32.totalorder %s28, 0
      %p153 = por %p151, %p152
      %p154 = scmp.ne.s32.totalorder %s140, %s141
      %p155 = scmp.eq.s32.totalorder %s29, 1
      %p156 = por %p154, %p155
      %p158 = scmp.ne.s32.totalorder %s141, %s157
      %p159 = scmp.eq.s32.totalorder %s29, 0
      %p160 = por %p158, %p159
      %p161 = scmp.le.s32.totalorder 1, %s23
      %p162 = scmp.lt.s32.totalorder %s23, 3
      %p163 = pnand %p161, %p162
      %p164 = pneg %p163
      // Predicated region
      $region9: #{tpu_custom_call.1} parent=5 // pred_check
        _
      $region10: #{tpu_custom_call.1} parent=5 // pred_check_branch
        %166 = sbr.rel (%p163) target = $region12
      $region11: #{tpu_custom_call.1} parent=5 // pred_region
        %s167 = ssub.s32 %s23, 1
      $region12: #{tpu_custom_call.1} parent=5 // pred_fallthru
        _
      %p168 = scmp.lt.s32.totalorder %s23, 2
      // Predicated region
      $region13: #{tpu_custom_call.1} parent=5 // pred_check
        %p169 = pneg %p168
      $region14: #{tpu_custom_call.1} parent=5 // pred_check_branch
        %171 = sbr.rel (%p169) target = $region16
      $region15: #{tpu_custom_call.1} parent=5 // pred_region
        // Predicated region
        $region17: #{tpu_custom_call.1} parent=15 // pred_check
          %p172 = pneg %p43
        $region18: #{tpu_custom_call.1} parent=15 // pred_check_branch
          %174 = sbr.rel (%p172) target = $region20
        $region19: #{tpu_custom_call.1} parent=15 // pred_region
          %s175 = sand.u32 %s33, 1
          %s176 = scalar_lea.sflag [#allocation3], %s175
          %s177 = sand.u32 %s33, 1
          %s178 = smul.addr %s177, 32
          %s179 = scalar_lea.vmem [#allocation2], %s178
          %s180 = smul.u32 4, %s23
          %s182 = ssub.s32 512, 512
          %183 = vsyncadd %s176, %s182
          %s184 = smul.addr %s180, 128
          %s185 = scalar_lea.hbm %s0, %s184
          %s186 = sshll.u32 %s179, 4
          %s187 = int_to_ptr.vmem [resolvable:$true] %s186
          %192 = dma.hbm_to_vmem [thread:$0]  %s185, 512, %s187, %s176, 128, 128, 8
        $region20: #{tpu_custom_call.1} parent=15 // pred_fallthru
          _
        // Predicated region
        $region21: #{tpu_custom_call.1} parent=15 // pred_check
          %p193 = pneg %p69
        $region22: #{tpu_custom_call.1} parent=15 // pred_check_branch
          %195 = sbr.rel (%p193) target = $region24
        $region23: #{tpu_custom_call.1} parent=15 // pred_region
          %s196 = sand.u32 %s23, 1
          %s197 = scalar_lea.sflag [#allocation6], %s196
          %s198 = sand.u32 %s59, 1
          %s199 = smul.addr %s198, 32
          %s200 = scalar_lea.vmem [#allocation5], %s199
          %s201 = smul.u32 4, %s23
          %s203 = ssub.s32 512, 512
          %204 = vsyncadd %s197, %s203
          %s205 = smul.addr %s201, 128
          %s206 = scalar_lea.hbm %s1, %s205
          %s207 = sshll.u32 %s200, 4
          %s208 = int_to_ptr.vmem [resolvable:$true] %s207
          %213 = dma.hbm_to_vmem [thread:$0]  %s206, 512, %s208, %s197, 128, 128, 8
        $region24: #{tpu_custom_call.1} parent=15 // pred_fallthru
          _
        // Predicated region
        $region25: #{tpu_custom_call.1} parent=15 // pred_check
          %p214 = pneg %p95
        $region26: #{tpu_custom_call.1} parent=15 // pred_check_branch
          %216 = sbr.rel (%p214) target = $region28
        $region27: #{tpu_custom_call.1} parent=15 // pred_region
          %s217 = sand.u32 %s23, 1
          %s218 = scalar_lea.sflag [#allocation6], %s217
          %s219 = sand.u32 %s85, 1
          %s220 = smul.addr %s219, 32
          %s221 = scalar_lea.vmem [#allocation7], %s220
          %s222 = smul.u32 4, %s23
          %s224 = ssub.s32 512, 512
          %225 = vsyncadd %s218, %s224
          %s226 = smul.addr %s222, 128
          %s227 = scalar_lea.hbm %s2, %s226
          %s228 = sshll.u32 %s221, 4
          %s229 = int_to_ptr.vmem [resolvable:$true] %s228
          %234 = dma.hbm_to_vmem [thread:$0]  %s227, 512, %s229, %s218, 128, 128, 8
        $region28: #{tpu_custom_call.1} parent=15 // pred_fallthru
          _
      $region16: #{tpu_custom_call.1} parent=5 // pred_fallthru
        _
      %p235 = scmp.le.s32.totalorder 1, %s23
      %p236 = scmp.lt.s32.totalorder %s23, 3
      %p237 = pnand %p235, %p236
      %p238 = pneg %p237
      // Predicated region
      $region29: #{tpu_custom_call.1} parent=5 // pred_check
        _
      $region30: #{tpu_custom_call.1} parent=5 // pred_check_branch
        %240 = sbr.rel (%p237) target = $region32
      $region31: #{tpu_custom_call.1} parent=5 // pred_region
        %s241 = ssub.s32 %s23, 1
        %s242 = sand.u32 %s36, 1
        %s243 = scalar_lea.sflag [#allocation3], %s242
        %s244 = sand.u32 %s36, 1
        %s245 = smul.addr %s244, 32
        %s246 = scalar_lea.vmem [#allocation2], %s245
        // Predicated region
        $region33: #{tpu_custom_call.1} parent=31 // pred_check
          %p247 = pneg %p49
        $region34: #{tpu_custom_call.1} parent=31 // pred_check_branch
          %249 = sbr.rel (%p247) target = $region36
        $region35: #{tpu_custom_call.1} parent=31 // pred_region
          %250 = dma.done %s243, 512
        $region36: #{tpu_custom_call.1} parent=31 // pred_fallthru
          _
        %s251 = sand.u32 %s28, 1
        %s252 = scalar_lea.sflag [#allocation6], %s251
        %s253 = sand.u32 %s62, 1
        %s254 = smul.addr %s253, 32
        %s255 = scalar_lea.vmem [#allocation5], %s254
        // Predicated region
        $region37: #{tpu_custom_call.1} parent=31 // pred_check
          %p256 = pneg %p75
        $region38: #{tpu_custom_call.1} parent=31 // pred_check_branch
          %258 = sbr.rel (%p256) target = $region40
        $region39: #{tpu_custom_call.1} parent=31 // pred_region
          %259 = dma.done %s252, 512
        $region40: #{tpu_custom_call.1} parent=31 // pred_fallthru
          _
        %s260 = sand.u32 %s28, 1
        %s261 = scalar_lea.sflag [#allocation6], %s260
        %s262 = sand.u32 %s88, 1
        %s263 = smul.addr %s262, 32
        %s264 = scalar_lea.vmem [#allocation7], %s263
        // Predicated region
        $region41: #{tpu_custom_call.1} parent=31 // pred_check
          %p265 = pneg %p101
        $region42: #{tpu_custom_call.1} parent=31 // pred_check_branch
          %267 = sbr.rel (%p265) target = $region44
        $region43: #{tpu_custom_call.1} parent=31 // pred_region
          %268 = dma.done %s261, 512
        $region44: #{tpu_custom_call.1} parent=31 // pred_fallthru
          _
        %s269 = sand.u32 %s36, 1
        %s270 = scalar_lea.sflag [#allocation3], %s269
        %s271 = sand.u32 %s36, 1
        %s272 = smul.addr %s271, 32
        %s273 = scalar_lea.vmem [#allocation2], %s272
        %p274 = pneg %p49
        %p275 = pneg %p46
        %s276 = sand.u32 %s28, 1
        %s277 = scalar_lea.sflag [#allocation6], %s276
        %s278 = sand.u32 %s62, 1
        %s279 = smul.addr %s278, 32
        %s280 = scalar_lea.vmem [#allocation5], %s279
        %p281 = pneg %p75
        %p282 = pneg %p72
        %s283 = sand.u32 %s28, 1
        %s284 = scalar_lea.sflag [#allocation6], %s283
        %s285 = sand.u32 %s88, 1
        %s286 = smul.addr %s285, 32
        %s287 = scalar_lea.vmem [#allocation7], %s286
        %p288 = pneg %p101
        %p289 = pneg %p98
        %p290 = pneg %p127
        %p291 = pneg %p124
        %s292 = sand.u32 %s114, 1
        %s293 = scalar_lea.sflag [#allocation4], %s292
        %s294 = sand.u32 %s114, 1
        %s295 = smul.addr %s294, 32
        %s296 = scalar_lea.vmem [#allocation8], %s295
        %p297 = pneg %p153
        %p298 = pneg %p150
        %s299 = sand.u32 %s140, 1
        %s300 = scalar_lea.sflag [#allocation10], %s299
        %s301 = sand.u32 %s140, 1
        %s302 = smul.addr %s301, 32
        %s303 = scalar_lea.vmem [#allocation9], %s302
        %s304 = smul.u32 4, %s28
        %s305 = smul.u32 4, %s28
        %s306 = smul.u32 4, %s28
        %s307 = smul.u32 4, %s28
        %s308 = smul.u32 4, %s28
        %v309 = vld [vmem:[%s246] sm:$0xff]
        %v310 = vld [vmem:[%s246 + $0x8] sm:$0xff]
        %v311 = vld [vmem:[%s246 + $0x10] sm:$0xff]
        %v312 = vld [vmem:[%s246 + $0x18] sm:$0xff]
        %v313 = vmul.f32 %v309, 0.35355338
        %v314 = vmul.f32 %v310, 0.35355338
        %v315 = vmul.f32 %v311, 0.35355338
        %v316 = vmul.f32 %v312, 0.35355338
        %v317 = vld [vmem:[%s255] sm:$0xff]
        %v318 = vld [vmem:[%s255 + $0x8] sm:$0xff]
        %v319 = vld [vmem:[%s255 + $0x10] sm:$0xff]
        %v320 = vld [vmem:[%s255 + $0x18] sm:$0xff]
        %v321 = vld [vmem:[%s264] sm:$0xff]
        %v322 = vld [vmem:[%s264 + $0x8] sm:$0xff]
        %v323 = vld [vmem:[%s264 + $0x10] sm:$0xff]
        %v324 = vld [vmem:[%s264 + $0x18] sm:$0xff]
        %vm325 = vcmask 64512
        %v327 = vsel %vm325, %v313, 0
        %v330 = vsel %vm325, %v317, 0
        %332 = vmatprep.subr.mxu0 0.0
        %333 = vmatpush1.xpose.msra.mxu0 0.0
        %334 = vmatprep.subr.mxu0 0.0
        %335 = vmatpush1.xpose.msra.mxu0 0.0
        %336 = vmatprep.subr.mxu0 0.0
        %337 = vmatpush1.xpose.msra.mxu0 0.0
        %338 = vmatprep.subr.mxu0 0.0
        %339 = vmatpush1.xpose.msra.mxu0 0.0
        %340 = vmatprep.subr.mxu0 0.0
        %341 = vmatpush1.xpose.msra.mxu0 0.0
        %342 = vmatprep.subr.mxu0 0.0
        %343 = vmatpush1.xpose.msra.mxu0 0.0
        %344 = vmatprep.subr.mxu0 0.0
        %345 = vmatpush1.xpose.msra.mxu0 0.0
        %346 = vmatprep.subr.mxu0 0.0
        %347 = vmatpush1.xpose.msra.mxu0 0.0
        %348 = vmatprep.subr.mxu0 0.0
        %349 = vmatpush1.xpose.msra.mxu0 0.0
        %350 = vmatprep.subr.mxu0 0.0
        %351 = vmatpush1.xpose.msra.mxu0 0.0
        %352 = vmatprep.subr.mxu0 0.0
        %353 = vmatpush1.xpose.msra.mxu0 0.0
        %354 = vmatprep.subr.mxu0 0.0
        %355 = vmatpush1.xpose.msra.mxu0 0.0
        %356 = vmatprep.subr.mxu0 0.0
        %357 = vmatpush1.xpose.msra.mxu0 0.0
        %358 = vmatprep.subr.mxu0 0.0
        %359 = vmatpush1.xpose.msra.mxu0 0.0
        %360 = vmatprep.subr.mxu0 0.0
        %361 = vmatpush1.xpose.msra.mxu0 0.0
        %362 = vmatprep.subr.mxu0 0.0
        %363 = vmatpush1.xpose.msra.mxu0 %v330
        %364 = vmatprep.subr.mxu0 0.0
        %365 = vmatpush2.xpose.msra.mxu0 0.0
        %366 = vmatprep.subr.mxu0 0.0
        %367 = vmatpush2.xpose.msra.mxu0 0.0
        %368 = vmatprep.subr.mxu0 0.0
        %369 = vmatpush2.xpose.msra.mxu0 0.0
        %370 = vmatprep.subr.mxu0 0.0
        %371 = vmatpush2.xpose.msra.mxu0 0.0
        %372 = vmatprep.subr.mxu0 0.0
        %373 = vmatpush2.xpose.msra.mxu0 0.0
        %374 = vmatprep.subr.mxu0 0.0
        %375 = vmatpush2.xpose.msra.mxu0 0.0
        %376 = vmatprep.subr.mxu0 0.0
        %377 = vmatpush2.xpose.msra.mxu0 0.0
        %378 = vmatprep.subr.mxu0 0.0
        %379 = vmatpush2.xpose.msra.mxu0 0.0
        %380 = vmatprep.subr.mxu0 0.0
        %381 = vmatpush2.xpose.msra.mxu0 0.0
        %382 = vmatprep.subr.mxu0 0.0
        %383 = vmatpush2.xpose.msra.mxu0 0.0
        %384 = vmatprep.subr.mxu0 0.0
        %385 = vmatpush2.xpose.msra.mxu0 0.0
        %386 = vmatprep.subr.mxu0 0.0
        %387 = vmatpush2.xpose.msra.mxu0 0.0
        %388 = vmatprep.subr.mxu0 0.0
        %389 = vmatpush2.xpose.msra.mxu0 0.0
        %390 = vmatprep.subr.mxu0 0.0
        %391 = vmatpush2.xpose.msra.mxu0 0.0
        %392 = vmatprep.subr.mxu0 0.0
        %393 = vmatpush2.xpose.msra.mxu0 0.0
        %394 = vmatprep.subr.mxu0 0.0
        %395 = vmatpush2.xpose.msra.mxu0 0.0
        %396 = vmatprep.mubr.f32.mxu0 0.0
        %397 = vmatmul.mubr.f32.gmra.mxu0 %v327
        %v398 = vpop.f32.mrf.mxu0
        %v399 = vadd.f32 0.0, %v398
        %v400 = vpop.f32.mrf.mxu0
        %401 = vdwg.mxu0
        %v403 = vsel %vm325, %v314, 0
        %v406 = vsel %vm325, %v318, 0
        %408 = vmatprep.subr.mxu0 0.0
        %409 = vmatpush1.xpose.msra.mxu0 0.0
        %410 = vmatprep.subr.mxu0 0.0
        %411 = vmatpush1.xpose.msra.mxu0 0.0
        %412 = vmatprep.subr.mxu0 0.0
        %413 = vmatpush1.xpose.msra.mxu0 0.0
        %414 = vmatprep.subr.mxu0 0.0
        %415 = vmatpush1.xpose.msra.mxu0 0.0
        %416 = vmatprep.subr.mxu0 0.0
        %417 = vmatpush1.xpose.msra.mxu0 0.0
        %418 = vmatprep.subr.mxu0 0.0
        %419 = vmatpush1.xpose.msra.mxu0 0.0
        %420 = vmatprep.subr.mxu0 0.0
        %421 = vmatpush1.xpose.msra.mxu0 0.0
        %422 = vmatprep.subr.mxu0 0.0
        %423 = vmatpush1.xpose.msra.mxu0 0.0
        %424 = vmatprep.subr.mxu0 0.0
        %425 = vmatpush1.xpose.msra.mxu0 0.0
        %426 = vmatprep.subr.mxu0 0.0
        %427 = vmatpush1.xpose.msra.mxu0 0.0
        %428 = vmatprep.subr.mxu0 0.0
        %429 = vmatpush1.xpose.msra.mxu0 0.0
        %430 = vmatprep.subr.mxu0 0.0
        %431 = vmatpush1.xpose.msra.mxu0 0.0
        %432 = vmatprep.subr.mxu0 0.0
        %433 = vmatpush1.xpose.msra.mxu0 0.0
        %434 = vmatprep.subr.mxu0 0.0
        %435 = vmatpush1.xpose.msra.mxu0 0.0
        %436 = vmatprep.subr.mxu0 0.0
        %437 = vmatpush1.xpose.msra.mxu0 0.0
        %438 = vmatprep.subr.mxu0 0.0
        %439 = vmatpush1.xpose.msra.mxu0 %v406
        %440 = vmatprep.subr.mxu0 0.0
        %441 = vmatpush2.xpose.msra.mxu0 0.0
        %442 = vmatprep.subr.mxu0 0.0
        %443 = vmatpush2.xpose.msra.mxu0 0.0
        %444 = vmatprep.subr.mxu0 0.0
        %445 = vmatpush2.xpose.msra.mxu0 0.0
        %446 = vmatprep.subr.mxu0 0.0
        %447 = vmatpush2.xpose.msra.mxu0 0.0
        %448 = vmatprep.subr.mxu0 0.0
        %449 = vmatpush2.xpose.msra.mxu0 0.0
        %450 = vmatprep.subr.mxu0 0.0
        %451 = vmatpush2.xpose.msra.mxu0 0.0
        %452 = vmatprep.subr.mxu0 0.0
        %453 = vmatpush2.xpose.msra.mxu0 0.0
        %454 = vmatprep.subr.mxu0 0.0
        %455 = vmatpush2.xpose.msra.mxu0 0.0
        %456 = vmatprep.subr.mxu0 0.0
        %457 = vmatpush2.xpose.msra.mxu0 0.0
        %458 = vmatprep.subr.mxu0 0.0
        %459 = vmatpush2.xpose.msra.mxu0 0.0
        %460 = vmatprep.subr.mxu0 0.0
        %461 = vmatpush2.xpose.msra.mxu0 0.0
        %462 = vmatprep.subr.mxu0 0.0
        %463 = vmatpush2.xpose.msra.mxu0 0.0
        %464 = vmatprep.subr.mxu0 0.0
        %465 = vmatpush2.xpose.msra.mxu0 0.0
        %466 = vmatprep.subr.mxu0 0.0
        %467 = vmatpush2.xpose.msra.mxu0 0.0
        %468 = vmatprep.subr.mxu0 0.0
        %469 = vmatpush2.xpose.msra.mxu0 0.0
        %470 = vmatprep.subr.mxu0 0.0
        %471 = vmatpush2.xpose.msra.mxu0 0.0
        %472 = vmatprep.mubr.f32.mxu0 0.0
        %473 = vmatmul.mubr.f32.gmra.mxu0 %v403
        %v474 = vpop.f32.mrf.mxu0
        %v475 = vadd.f32 0.0, %v474
        %v476 = vpop.f32.mrf.mxu0
        %477 = vdwg.mxu0
        %v479 = vsel %vm325, %v315, 0
        %v482 = vsel %vm325, %v319, 0
        %484 = vmatprep.subr.mxu0 0.0
        %485 = vmatpush1.xpose.msra.mxu0 0.0
        %486 = vmatprep.subr.mxu0 0.0
        %487 = vmatpush1.xpose.msra.mxu0 0.0
        %488 = vmatprep.subr.mxu0 0.0
        %489 = vmatpush1.xpose.msra.mxu0 0.0
        %490 = vmatprep.subr.mxu0 0.0
        %491 = vmatpush1.xpose.msra.mxu0 0.0
        %492 = vmatprep.subr.mxu0 0.0
        %493 = vmatpush1.xpose.msra.mxu0 0.0
        %494 = vmatprep.subr.mxu0 0.0
        %495 = vmatpush1.xpose.msra.mxu0 0.0
        %496 = vmatprep.subr.mxu0 0.0
        %497 = vmatpush1.xpose.msra.mxu0 0.0
        %498 = vmatprep.subr.mxu0 0.0
        %499 = vmatpush1.xpose.msra.mxu0 0.0
        %500 = vmatprep.subr.mxu0 0.0
        %501 = vmatpush1.xpose.msra.mxu0 0.0
        %502 = vmatprep.subr.mxu0 0.0
        %503 = vmatpush1.xpose.msra.mxu0 0.0
        %504 = vmatprep.subr.mxu0 0.0
        %505 = vmatpush1.xpose.msra.mxu0 0.0
        %506 = vmatprep.subr.mxu0 0.0
        %507 = vmatpush1.xpose.msra.mxu0 0.0
        %508 = vmatprep.subr.mxu0 0.0
        %509 = vmatpush1.xpose.msra.mxu0 0.0
        %510 = vmatprep.subr.mxu0 0.0
        %511 = vmatpush1.xpose.msra.mxu0 0.0
        %512 = vmatprep.subr.mxu0 0.0
        %513 = vmatpush1.xpose.msra.mxu0 0.0
        %514 = vmatprep.subr.mxu0 0.0
        %515 = vmatpush1.xpose.msra.mxu0 %v482
        %516 = vmatprep.subr.mxu0 0.0
        %517 = vmatpush2.xpose.msra.mxu0 0.0
        %518 = vmatprep.subr.mxu0 0.0
        %519 = vmatpush2.xpose.msra.mxu0 0.0
        %520 = vmatprep.subr.mxu0 0.0
        %521 = vmatpush2.xpose.msra.mxu0 0.0
        %522 = vmatprep.subr.mxu0 0.0
        %523 = vmatpush2.xpose.msra.mxu0 0.0
        %524 = vmatprep.subr.mxu0 0.0
        %525 = vmatpush2.xpose.msra.mxu0 0.0
        %526 = vmatprep.subr.mxu0 0.0
        %527 = vmatpush2.xpose.msra.mxu0 0.0
        %528 = vmatprep.subr.mxu0 0.0
        %529 = vmatpush2.xpose.msra.mxu0 0.0
        %530 = vmatprep.subr.mxu0 0.0
        %531 = vmatpush2.xpose.msra.mxu0 0.0
        %532 = vmatprep.subr.mxu0 0.0
        %533 = vmatpush2.xpose.msra.mxu0 0.0
        %534 = vmatprep.subr.mxu0 0.0
        %535 = vmatpush2.xpose.msra.mxu0 0.0
        %536 = vmatprep.subr.mxu0 0.0
        %537 = vmatpush2.xpose.msra.mxu0 0.0
        %538 = vmatprep.subr.mxu0 0.0
        %539 = vmatpush2.xpose.msra.mxu0 0.0
        %540 = vmatprep.subr.mxu0 0.0
        %541 = vmatpush2.xpose.msra.mxu0 0.0
        %542 = vmatprep.subr.mxu0 0.0
        %543 = vmatpush2.xpose.msra.mxu0 0.0
        %544 = vmatprep.subr.mxu0 0.0
        %545 = vmatpush2.xpose.msra.mxu0 0.0
        %546 = vmatprep.subr.mxu0 0.0
        %547 = vmatpush2.xpose.msra.mxu0 0.0
        %548 = vmatprep.mubr.f32.mxu0 0.0
        %549 = vmatmul.mubr.f32.gmra.mxu0 %v479
        %v550 = vpop.f32.mrf.mxu0
        %v551 = vadd.f32 0.0, %v550
        %v552 = vpop.f32.mrf.mxu0
        %553 = vdwg.mxu0
        %v555 = vsel %vm325, %v316, 0
        %v558 = vsel %vm325, %v320, 0
        %560 = vmatprep.subr.mxu0 0.0
        %561 = vmatpush1.xpose.msra.mxu0 0.0
        %562 = vmatprep.subr.mxu0 0.0
        %563 = vmatpush1.xpose.msra.mxu0 0.0
        %564 = vmatprep.subr.mxu0 0.0
        %565 = vmatpush1.xpose.msra.mxu0 0.0
        %566 = vmatprep.subr.mxu0 0.0
        %567 = vmatpush1.xpose.msra.mxu0 0.0
        %568 = vmatprep.subr.mxu0 0.0
        %569 = vmatpush1.xpose.msra.mxu0 0.0
        %570 = vmatprep.subr.mxu0 0.0
        %571 = vmatpush1.xpose.msra.mxu0 0.0
        %572 = vmatprep.subr.mxu0 0.0
        %573 = vmatpush1.xpose.msra.mxu0 0.0
        %574 = vmatprep.subr.mxu0 0.0
        %575 = vmatpush1.xpose.msra.mxu0 0.0
        %576 = vmatprep.subr.mxu0 0.0
        %577 = vmatpush1.xpose.msra.mxu0 0.0
        %578 = vmatprep.subr.mxu0 0.0
        %579 = vmatpush1.xpose.msra.mxu0 0.0
        %580 = vmatprep.subr.mxu0 0.0
        %581 = vmatpush1.xpose.msra.mxu0 0.0
        %582 = vmatprep.subr.mxu0 0.0
        %583 = vmatpush1.xpose.msra.mxu0 0.0
        %584 = vmatprep.subr.mxu0 0.0
        %585 = vmatpush1.xpose.msra.mxu0 0.0
        %586 = vmatprep.subr.mxu0 0.0
        %587 = vmatpush1.xpose.msra.mxu0 0.0
        %588 = vmatprep.subr.mxu0 0.0
        %589 = vmatpush1.xpose.msra.mxu0 0.0
        %590 = vmatprep.subr.mxu0 0.0
        %591 = vmatpush1.xpose.msra.mxu0 %v558
        %592 = vmatprep.subr.mxu0 0.0
        %593 = vmatpush2.xpose.msra.mxu0 0.0
        %594 = vmatprep.subr.mxu0 0.0
        %595 = vmatpush2.xpose.msra.mxu0 0.0
        %596 = vmatprep.subr.mxu0 0.0
        %597 = vmatpush2.xpose.msra.mxu0 0.0
        %598 = vmatprep.subr.mxu0 0.0
        %599 = vmatpush2.xpose.msra.mxu0 0.0
        %600 = vmatprep.subr.mxu0 0.0
        %601 = vmatpush2.xpose.msra.mxu0 0.0
        %602 = vmatprep.subr.mxu0 0.0
        %603 = vmatpush2.xpose.msra.mxu0 0.0
        %604 = vmatprep.subr.mxu0 0.0
        %605 = vmatpush2.xpose.msra.mxu0 0.0
        %606 = vmatprep.subr.mxu0 0.0
        %607 = vmatpush2.xpose.msra.mxu0 0.0
        %608 = vmatprep.subr.mxu0 0.0
        %609 = vmatpush2.xpose.msra.mxu0 0.0
        %610 = vmatprep.subr.mxu0 0.0
        %611 = vmatpush2.xpose.msra.mxu0 0.0
        %612 = vmatprep.subr.mxu0 0.0
        %613 = vmatpush2.xpose.msra.mxu0 0.0
        %614 = vmatprep.subr.mxu0 0.0
        %615 = vmatpush2.xpose.msra.mxu0 0.0
        %616 = vmatprep.subr.mxu0 0.0
        %617 = vmatpush2.xpose.msra.mxu0 0.0
        %618 = vmatprep.subr.mxu0 0.0
        %619 = vmatpush2.xpose.msra.mxu0 0.0
        %620 = vmatprep.subr.mxu0 0.0
        %621 = vmatpush2.xpose.msra.mxu0 0.0
        %622 = vmatprep.subr.mxu0 0.0
        %623 = vmatpush2.xpose.msra.mxu0 0.0
        %624 = vmatprep.mubr.f32.mxu0 0.0
        %625 = vmatmul.mubr.f32.gmra.mxu0 %v555
        %v626 = vpop.f32.mrf.mxu0
        %v627 = vadd.f32 0.0, %v626
        %v628 = vpop.f32.mrf.mxu0
        %629 = vdwg.mxu0
        %v630 = vsel %vm325, %v399, -inf
        %631 = vmax.xlane.f32.xlu0 %v630
        %v632 = vpop.xlane.xlu0 %631
        %v633 = vsel %vm325, %v475, -inf
        %634 = vmax.xlane.f32.xlu0 %v633
        %v635 = vpop.xlane.xlu0 %634
        %v636 = vsel %vm325, %v551, -inf
        %637 = vmax.xlane.f32.xlu0 %v636
        %v638 = vpop.xlane.xlu0 %637
        %v639 = vsel %vm325, %v627, -inf
        %640 = vmax.xlane.f32.xlu0 %v639
        %v641 = vpop.xlane.xlu0 %640
        %v642 = vsub.f32 %v399, %v632
        %v643 = vsub.f32 %v475, %v635
        %v644 = vsub.f32 %v551, %v638
        %v645 = vsub.f32 %v627, %v641
        %v646 = vmul.f32 %v642, 1.442695
        %v647 = vpow.pop %v646
        %v648 = vmul.f32 %v643, 1.442695
        %v649 = vpow.pop %v648
        %v650 = vmul.f32 %v644, 1.442695
        %v651 = vpow.pop %v650
        %v652 = vmul.f32 %v645, 1.442695
        %v653 = vpow.pop %v652
        %v654 = vsel %vm325, %v647, 0.0
        %655 = vadd.xlane.f32.xlu0 %v654
        %v656 = vpop.xlane.xlu0 %655
        %v657 = vsel %vm325, %v649, 0.0
        %658 = vadd.xlane.f32.xlu0 %v657
        %v659 = vpop.xlane.xlu0 %658
        %v660 = vsel %vm325, %v651, 0.0
        %661 = vadd.xlane.f32.xlu0 %v660
        %v662 = vpop.xlane.xlu0 %661
        %v663 = vsel %vm325, %v653, 0.0
        %664 = vadd.xlane.f32.xlu0 %v663
        %v665 = vpop.xlane.xlu0 %664
        %v666 = vrcp.pop %v656
        %v667 = vrcp.pop %v659
        %v668 = vrcp.pop %v662
        %v669 = vrcp.pop %v665
        %v670 = vmul.f32 %v647, %v666
        %v671 = vmul.f32 %v649, %v667
        %v672 = vmul.f32 %v651, %v668
        %v673 = vmul.f32 %v653, %v669
        %674 = vst.msk [vmem:[%s303] sm:$0xff] %vm325, %v670
        %675 = vst.msk [vmem:[%s303 + $0x8] sm:$0xff] %vm325, %v671
        %676 = vst.msk [vmem:[%s303 + $0x10] sm:$0xff] %vm325, %v672
        %677 = vst.msk [vmem:[%s303 + $0x18] sm:$0xff] %vm325, %v673
        %v679 = vsel %vm325, %v670, 0
        %681 = vmatprep.subr.mxu0 0.0
        %682 = vmatpush1.msra.mxu0 0.0
        %683 = vmatprep.subr.mxu0 0.0
        %684 = vmatpush1.msra.mxu0 0.0
        %685 = vmatprep.subr.mxu0 0.0
        %686 = vmatpush1.msra.mxu0 0.0
        %687 = vmatprep.subr.mxu0 0.0
        %688 = vmatpush1.msra.mxu0 0.0
        %689 = vmatprep.subr.mxu0 0.0
        %690 = vmatpush1.msra.mxu0 0.0
        %691 = vmatprep.subr.mxu0 0.0
        %692 = vmatpush1.msra.mxu0 0.0
        %693 = vmatprep.subr.mxu0 0.0
        %694 = vmatpush1.msra.mxu0 0.0
        %695 = vmatprep.subr.mxu0 0.0
        %696 = vmatpush1.msra.mxu0 0.0
        %697 = vmatprep.subr.mxu0 0.0
        %698 = vmatpush1.msra.mxu0 0.0
        %699 = vmatprep.subr.mxu0 0.0
        %700 = vmatpush1.msra.mxu0 0.0
        %701 = vmatprep.subr.mxu0 0.0
        %702 = vmatpush1.msra.mxu0 0.0
        %703 = vmatprep.subr.mxu0 0.0
        %704 = vmatpush1.msra.mxu0 0.0
        %705 = vmatprep.subr.mxu0 0.0
        %706 = vmatpush1.msra.mxu0 0.0
        %707 = vmatprep.subr.mxu0 0.0
        %708 = vmatpush1.msra.mxu0 0.0
        %709 = vmatprep.subr.mxu0 0.0
        %710 = vmatpush1.msra.mxu0 0.0
        %711 = vmatprep.subr.mxu0 0.0
        %712 = vmatpush1.msra.mxu0 %v321
        %713 = vmatprep.subr.mxu0 0.0
        %714 = vmatpush2.msra.mxu0 0.0
        %715 = vmatprep.subr.mxu0 0.0
        %716 = vmatpush2.msra.mxu0 0.0
        %717 = vmatprep.subr.mxu0 0.0
        %718 = vmatpush2.msra.mxu0 0.0
        %719 = vmatprep.subr.mxu0 0.0
        %720 = vmatpush2.msra.mxu0 0.0
        %721 = vmatprep.subr.mxu0 0.0
        %722 = vmatpush2.msra.mxu0 0.0
        %723 = vmatprep.subr.mxu0 0.0
        %724 = vmatpush2.msra.mxu0 0.0
        %725 = vmatprep.subr.mxu0 0.0
        %726 = vmatpush2.msra.mxu0 0.0
        %727 = vmatprep.subr.mxu0 0.0
        %728 = vmatpush2.msra.mxu0 0.0
        %729 = vmatprep.subr.mxu0 0.0
        %730 = vmatpush2.msra.mxu0 0.0
        %731 = vmatprep.subr.mxu0 0.0
        %732 = vmatpush2.msra.mxu0 0.0
        %733 = vmatprep.subr.mxu0 0.0
        %734 = vmatpush2.msra.mxu0 0.0
        %735 = vmatprep.subr.mxu0 0.0
        %736 = vmatpush2.msra.mxu0 0.0
        %737 = vmatprep.subr.mxu0 0.0
        %738 = vmatpush2.msra.mxu0 0.0
        %739 = vmatprep.subr.mxu0 0.0
        %740 = vmatpush2.msra.mxu0 0.0
        %741 = vmatprep.subr.mxu0 0.0
        %742 = vmatpush2.msra.mxu0 0.0
        %743 = vmatprep.subr.mxu0 0.0
        %744 = vmatpush2.msra.mxu0 0.0
        %745 = vmatprep.mubr.f32.mxu0 0.0
        %746 = vmatmul.mubr.f32.gmra.mxu0 %v679
        %v747 = vpop.f32.mrf.mxu0
        %v748 = vadd.f32 0.0, %v747
        %v749 = vpop.f32.mrf.mxu0
        %750 = vdwg.mxu0
        %v752 = vsel %vm325, %v671, 0
        %754 = vmatprep.subr.mxu0 0.0
        %755 = vmatpush1.msra.mxu0 0.0
        %756 = vmatprep.subr.mxu0 0.0
        %757 = vmatpush1.msra.mxu0 0.0
        %758 = vmatprep.subr.mxu0 0.0
        %759 = vmatpush1.msra.mxu0 0.0
        %760 = vmatprep.subr.mxu0 0.0
        %761 = vmatpush1.msra.mxu0 0.0
        %762 = vmatprep.subr.mxu0 0.0
        %763 = vmatpush1.msra.mxu0 0.0
        %764 = vmatprep.subr.mxu0 0.0
        %765 = vmatpush1.msra.mxu0 0.0
        %766 = vmatprep.subr.mxu0 0.0
        %767 = vmatpush1.msra.mxu0 0.0
        %768 = vmatprep.subr.mxu0 0.0
        %769 = vmatpush1.msra.mxu0 0.0
        %770 = vmatprep.subr.mxu0 0.0
        %771 = vmatpush1.msra.mxu0 0.0
        %772 = vmatprep.subr.mxu0 0.0
        %773 = vmatpush1.msra.mxu0 0.0
        %774 = vmatprep.subr.mxu0 0.0
        %775 = vmatpush1.msra.mxu0 0.0
        %776 = vmatprep.subr.mxu0 0.0
        %777 = vmatpush1.msra.mxu0 0.0
        %778 = vmatprep.subr.mxu0 0.0
        %779 = vmatpush1.msra.mxu0 0.0
        %780 = vmatprep.subr.mxu0 0.0
        %781 = vmatpush1.msra.mxu0 0.0
        %782 = vmatprep.subr.mxu0 0.0
        %783 = vmatpush1.msra.mxu0 0.0
        %784 = vmatprep.subr.mxu0 0.0
        %785 = vmatpush1.msra.mxu0 %v322
        %786 = vmatprep.subr.mxu0 0.0
        %787 = vmatpush2.msra.mxu0 0.0
        %788 = vmatprep.subr.mxu0 0.0
        %789 = vmatpush2.msra.mxu0 0.0
        %790 = vmatprep.subr.mxu0 0.0
        %791 = vmatpush2.msra.mxu0 0.0
        %792 = vmatprep.subr.mxu0 0.0
        %793 = vmatpush2.msra.mxu0 0.0
        %794 = vmatprep.subr.mxu0 0.0
        %795 = vmatpush2.msra.mxu0 0.0
        %796 = vmatprep.subr.mxu0 0.0
        %797 = vmatpush2.msra.mxu0 0.0
        %798 = vmatprep.subr.mxu0 0.0
        %799 = vmatpush2.msra.mxu0 0.0
        %800 = vmatprep.subr.mxu0 0.0
        %801 = vmatpush2.msra.mxu0 0.0
        %802 = vmatprep.subr.mxu0 0.0
        %803 = vmatpush2.msra.mxu0 0.0
        %804 = vmatprep.subr.mxu0 0.0
        %805 = vmatpush2.msra.mxu0 0.0
        %806 = vmatprep.subr.mxu0 0.0
        %807 = vmatpush2.msra.mxu0 0.0
        %808 = vmatprep.subr.mxu0 0.0
        %809 = vmatpush2.msra.mxu0 0.0
        %810 = vmatprep.subr.mxu0 0.0
        %811 = vmatpush2.msra.mxu0 0.0
        %812 = vmatprep.subr.mxu0 0.0
        %813 = vmatpush2.msra.mxu0 0.0
        %814 = vmatprep.subr.mxu0 0.0
        %815 = vmatpush2.msra.mxu0 0.0
        %816 = vmatprep.subr.mxu0 0.0
        %817 = vmatpush2.msra.mxu0 0.0
        %818 = vmatprep.mubr.f32.mxu0 0.0
        %819 = vmatmul.mubr.f32.gmra.mxu0 %v752
        %v820 = vpop.f32.mrf.mxu0
        %v821 = vadd.f32 0.0, %v820
        %v822 = vpop.f32.mrf.mxu0
        %823 = vdwg.mxu0
        %v825 = vsel %vm325, %v672, 0
        %827 = vmatprep.subr.mxu0 0.0
        %828 = vmatpush1.msra.mxu0 0.0
        %829 = vmatprep.subr.mxu0 0.0
        %830 = vmatpush1.msra.mxu0 0.0
        %831 = vmatprep.subr.mxu0 0.0
        %832 = vmatpush1.msra.mxu0 0.0
        %833 = vmatprep.subr.mxu0 0.0
        %834 = vmatpush1.msra.mxu0 0.0
        %835 = vmatprep.subr.mxu0 0.0
        %836 = vmatpush1.msra.mxu0 0.0
        %837 = vmatprep.subr.mxu0 0.0
        %838 = vmatpush1.msra.mxu0 0.0
        %839 = vmatprep.subr.mxu0 0.0
        %840 = vmatpush1.msra.mxu0 0.0
        %841 = vmatprep.subr.mxu0 0.0
        %842 = vmatpush1.msra.mxu0 0.0
        %843 = vmatprep.subr.mxu0 0.0
        %844 = vmatpush1.msra.mxu0 0.0
        %845 = vmatprep.subr.mxu0 0.0
        %846 = vmatpush1.msra.mxu0 0.0
        %847 = vmatprep.subr.mxu0 0.0
        %848 = vmatpush1.msra.mxu0 0.0
        %849 = vmatprep.subr.mxu0 0.0
        %850 = vmatpush1.msra.mxu0 0.0
        %851 = vmatprep.subr.mxu0 0.0
        %852 = vmatpush1.msra.mxu0 0.0
        %853 = vmatprep.subr.mxu0 0.0
        %854 = vmatpush1.msra.mxu0 0.0
        %855 = vmatprep.subr.mxu0 0.0
        %856 = vmatpush1.msra.mxu0 0.0
        %857 = vmatprep.subr.mxu0 0.0
        %858 = vmatpush1.msra.mxu0 %v323
        %859 = vmatprep.subr.mxu0 0.0
        %860 = vmatpush2.msra.mxu0 0.0
        %861 = vmatprep.subr.mxu0 0.0
        %862 = vmatpush2.msra.mxu0 0.0
        %863 = vmatprep.subr.mxu0 0.0
        %864 = vmatpush2.msra.mxu0 0.0
        %865 = vmatprep.subr.mxu0 0.0
        %866 = vmatpush2.msra.mxu0 0.0
        %867 = vmatprep.subr.mxu0 0.0
        %868 = vmatpush2.msra.mxu0 0.0
        %869 = vmatprep.subr.mxu0 0.0
        %870 = vmatpush2.msra.mxu0 0.0
        %871 = vmatprep.subr.mxu0 0.0
        %872 = vmatpush2.msra.mxu0 0.0
        %873 = vmatprep.subr.mxu0 0.0
        %874 = vmatpush2.msra.mxu0 0.0
        %875 = vmatprep.subr.mxu0 0.0
        %876 = vmatpush2.msra.mxu0 0.0
        %877 = vmatprep.subr.mxu0 0.0
        %878 = vmatpush2.msra.mxu0 0.0
        %879 = vmatprep.subr.mxu0 0.0
        %880 = vmatpush2.msra.mxu0 0.0
        %881 = vmatprep.subr.mxu0 0.0
        %882 = vmatpush2.msra.mxu0 0.0
        %883 = vmatprep.subr.mxu0 0.0
        %884 = vmatpush2.msra.mxu0 0.0
        %885 = vmatprep.subr.mxu0 0.0
        %886 = vmatpush2.msra.mxu0 0.0
        %887 = vmatprep.subr.mxu0 0.0
        %888 = vmatpush2.msra.mxu0 0.0
        %889 = vmatprep.subr.mxu0 0.0
        %890 = vmatpush2.msra.mxu0 0.0
        %891 = vmatprep.mubr.f32.mxu0 0.0
        %892 = vmatmul.mubr.f32.gmra.mxu0 %v825
        %v893 = vpop.f32.mrf.mxu0
        %v894 = vadd.f32 0.0, %v893
        %v895 = vpop.f32.mrf.mxu0
        %896 = vdwg.mxu0
        %v898 = vsel %vm325, %v673, 0
        %900 = vmatprep.subr.mxu0 0.0
        %901 = vmatpush1.msra.mxu0 0.0
        %902 = vmatprep.subr.mxu0 0.0
        %903 = vmatpush1.msra.mxu0 0.0
        %904 = vmatprep.subr.mxu0 0.0
        %905 = vmatpush1.msra.mxu0 0.0
        %906 = vmatprep.subr.mxu0 0.0
        %907 = vmatpush1.msra.mxu0 0.0
        %908 = vmatprep.subr.mxu0 0.0
        %909 = vmatpush1.msra.mxu0 0.0
        %910 = vmatprep.subr.mxu0 0.0
        %911 = vmatpush1.msra.mxu0 0.0
        %912 = vmatprep.subr.mxu0 0.0
        %913 = vmatpush1.msra.mxu0 0.0
        %914 = vmatprep.subr.mxu0 0.0
        %915 = vmatpush1.msra.mxu0 0.0
        %916 = vmatprep.subr.mxu0 0.0
        %917 = vmatpush1.msra.mxu0 0.0
        %918 = vmatprep.subr.mxu0 0.0
        %919 = vmatpush1.msra.mxu0 0.0
        %920 = vmatprep.subr.mxu0 0.0
        %921 = vmatpush1.msra.mxu0 0.0
        %922 = vmatprep.subr.mxu0 0.0
        %923 = vmatpush1.msra.mxu0 0.0
        %924 = vmatprep.subr.mxu0 0.0
        %925 = vmatpush1.msra.mxu0 0.0
        %926 = vmatprep.subr.mxu0 0.0
        %927 = vmatpush1.msra.mxu0 0.0
        %928 = vmatprep.subr.mxu0 0.0
        %929 = vmatpush1.msra.mxu0 0.0
        %930 = vmatprep.subr.mxu0 0.0
        %931 = vmatpush1.msra.mxu0 %v324
        %932 = vmatprep.subr.mxu0 0.0
        %933 = vmatpush2.msra.mxu0 0.0
        %934 = vmatprep.subr.mxu0 0.0
        %935 = vmatpush2.msra.mxu0 0.0
        %936 = vmatprep.subr.mxu0 0.0
        %937 = vmatpush2.msra.mxu0 0.0
        %938 = vmatprep.subr.mxu0 0.0
        %939 = vmatpush2.msra.mxu0 0.0
        %940 = vmatprep.subr.mxu0 0.0
        %941 = vmatpush2.msra.mxu0 0.0
        %942 = vmatprep.subr.mxu0 0.0
        %943 = vmatpush2.msra.mxu0 0.0
        %944 = vmatprep.subr.mxu0 0.0
        %945 = vmatpush2.msra.mxu0 0.0
        %946 = vmatprep.subr.mxu0 0.0
        %947 = vmatpush2.msra.mxu0 0.0
        %948 = vmatprep.subr.mxu0 0.0
        %949 = vmatpush2.msra.mxu0 0.0
        %950 = vmatprep.subr.mxu0 0.0
        %951 = vmatpush2.msra.mxu0 0.0
        %952 = vmatprep.subr.mxu0 0.0
        %953 = vmatpush2.msra.mxu0 0.0
        %954 = vmatprep.subr.mxu0 0.0
        %955 = vmatpush2.msra.mxu0 0.0
        %956 = vmatprep.subr.mxu0 0.0
        %957 = vmatpush2.msra.mxu0 0.0
        %958 = vmatprep.subr.mxu0 0.0
        %959 = vmatpush2.msra.mxu0 0.0
        %960 = vmatprep.subr.mxu0 0.0
        %961 = vmatpush2.msra.mxu0 0.0
        %962 = vmatprep.subr.mxu0 0.0
        %963 = vmatpush2.msra.mxu0 0.0
        %964 = vmatprep.mubr.f32.mxu0 0.0
        %965 = vmatmul.mubr.f32.gmra.mxu0 %v898
        %v966 = vpop.f32.mrf.mxu0
        %v967 = vadd.f32 0.0, %v966
        %v968 = vpop.f32.mrf.mxu0
        %969 = vdwg.mxu0
        %970 = vst.msk [vmem:[%s296] sm:$0xff] %vm325, %v748
        %971 = vst.msk [vmem:[%s296 + $0x8] sm:$0xff] %vm325, %v821
        %972 = vst.msk [vmem:[%s296 + $0x10] sm:$0xff] %vm325, %v894
        %973 = vst.msk [vmem:[%s296 + $0x18] sm:$0xff] %vm325, %v967
        %s974 = sand.u32 %s114, 1
        %s975 = scalar_lea.sflag [#allocation4], %s974
        %s976 = sand.u32 %s114, 1
        %s977 = smul.addr %s976, 32
        %s978 = scalar_lea.vmem [#allocation8], %s977
        %s979 = sand.u32 %s140, 1
        %s980 = scalar_lea.sflag [#allocation10], %s979
        %s981 = sand.u32 %s140, 1
        %s982 = smul.addr %s981, 32
        %s983 = scalar_lea.vmem [#allocation9], %s982
        // Predicated region
        $region45: #{tpu_custom_call.1} parent=31 // pred_check
          %p984 = pneg %p124
        $region46: #{tpu_custom_call.1} parent=31 // pred_check_branch
          %986 = sbr.rel (%p984) target = $region48
        $region47: #{tpu_custom_call.1} parent=31 // pred_region
          %s987 = smul.u32 4, %s28
          %s989 = ssub.s32 512, 512
          %990 = vsyncadd %s975, %s989
          %s991 = smul.addr %s987, 128
          %s992 = scalar_lea.hbm %s3, %s991
          %s993 = sshll.u32 %s978, 4
          %s994 = int_to_ptr.vmem [resolvable:$true] %s993
          %999 = dma.vmem_to_hbm [thread:$0]  %s994, 512, %s992, %s975, 128, 128, 8
        $region48: #{tpu_custom_call.1} parent=31 // pred_fallthru
          _
        // Predicated region
        $region49: #{tpu_custom_call.1} parent=31 // pred_check
          %p1000 = pneg %p150
        $region50: #{tpu_custom_call.1} parent=31 // pred_check_branch
          %1002 = sbr.rel (%p1000) target = $region52
        $region51: #{tpu_custom_call.1} parent=31 // pred_region
          %s1003 = smul.u32 4, %s28
          %s1005 = ssub.s32 512, 512
          %1006 = vsyncadd %s980, %s1005
          %s1007 = smul.addr %s1003, 128
          %s1008 = scalar_lea.hbm %s4, %s1007
          %s1009 = sshll.u32 %s983, 4
          %s1010 = int_to_ptr.vmem [resolvable:$true] %s1009
          %1015 = dma.vmem_to_hbm [thread:$0]  %s1010, 512, %s1008, %s980, 128, 128, 8
        $region52: #{tpu_custom_call.1} parent=31 // pred_fallthru
          _
      $region32: #{tpu_custom_call.1} parent=5 // pred_fallthru
        _
      %p1016 = scmp.le.s32.totalorder 2, %s23
      // Predicated region
      $region53: #{tpu_custom_call.1} parent=5 // pred_check
        %p1017 = pneg %p1016
      $region54: #{tpu_custom_call.1} parent=5 // pred_check_branch
        %1019 = sbr.rel (%p1017) target = $region56
      $region55: #{tpu_custom_call.1} parent=5 // pred_region
        %s1020 = ssub.s32 %s23, 2
        // Predicated region
        $region57: #{tpu_custom_call.1} parent=55 // pred_check
          %p1021 = pneg %p130
        $region58: #{tpu_custom_call.1} parent=55 // pred_check_branch
          %1023 = sbr.rel (%p1021) target = $region60
        $region59: #{tpu_custom_call.1} parent=55 // pred_region
          %s1024 = sand.u32 %s115, 1
          %s1025 = scalar_lea.sflag [#allocation4], %s1024
          %s1026 = sand.u32 %s115, 1
          %s1027 = smul.addr %s1026, 32
          %s1028 = scalar_lea.vmem [#allocation8], %s1027
          %1029 = dma.done %s1025, 512
        $region60: #{tpu_custom_call.1} parent=55 // pred_fallthru
          _
        // Predicated region
        $region61: #{tpu_custom_call.1} parent=55 // pred_check
          %p1030 = pneg %p156
        $region62: #{tpu_custom_call.1} parent=55 // pred_check_branch
          %1032 = sbr.rel (%p1030) target = $region64
        $region63: #{tpu_custom_call.1} parent=55 // pred_region
          %s1033 = sand.u32 %s141, 1
          %s1034 = scalar_lea.sflag [#allocation10], %s1033
          %s1035 = sand.u32 %s141, 1
          %s1036 = smul.addr %s1035, 32
          %s1037 = scalar_lea.vmem [#allocation9], %s1036
          %1038 = dma.done %s1034, 512
        $region64: #{tpu_custom_call.1} parent=55 // pred_fallthru
          _
      $region56: #{tpu_custom_call.1} parent=5 // pred_fallthru
        _
    $region6: #{tpu_custom_call.1} parent=1 // loop_footer
      %s27 = sadd.s32 1, %s23
    $region7: #{tpu_custom_call.1} parent=1 // loop_footer_branch
      %22 = sbr.rel target = $region3
    $region8: #{tpu_custom_call.1} parent=1 // loop_exit
      _
    %1039 = vsyncpa [#allocation3], 1
    %s1040 = scalar_lea.sflag [#allocation3], 1
    %1041 = vsyncpa %s1040, 1
    %1042 = vsyncpa [#allocation6], 1
    %s1043 = scalar_lea.sflag [#allocation6], 1
    %1044 = vsyncpa %s1043, 1
    %1045 = vsyncpa [#allocation4], 1
    %s1046 = scalar_lea.sflag [#allocation4], 1
    %1047 = vsyncpa %s1046, 1
    %1048 = vsyncpa [#allocation10], 1
    %s1049 = scalar_lea.sflag [#allocation10], 1
    %1050 = vsyncpa %s1049, 1

</llo_original>
